<compile_context>
chip_gen: v7x
topology: tpu7x:2x2x1
jax: 0.10.0
libtpu: 0.0.40
codegen_flags: <defaults>
</compile_context>

<pallas_src>
import jax
import jax.numpy as jnp
from jax import lax
from jax.experimental import pallas as pl
from jax.experimental.pallas import tpu as pltpu

D_IN, H1, H2, H3, D_OUT = 64, 200, 100, 20, 1
TB_MAX = 1024  # max batch tile (lane axis); multiple of 128; sweep 1024-2048 per gen


def _mlp_kernel(x_ref, w1_ref, b1_ref, w2_ref, b2_ref,
                w3_ref, b3_ref, w4_ref, b4_ref, o_ref):
    bf16 = jnp.bfloat16
    # x arrives in its native (tb, 64) f32 layout; cast to bf16 and contract
    # with the (out, in) weight keeping the batch axis on lanes:
    #   (200, 64) . (tb, 64)^T -> (200, tb)
    xb = x_ref[...].astype(bf16)                                        # (tb, 64)

    # Layer 1: f32 accumulate + bias + ReLU.
    h = lax.dot_general(w1_ref[...], xb, (((1,), (1,)), ((), ())),
                        preferred_element_type=jnp.float32) + b1_ref[...]
    h = jnp.maximum(h, 0.0)                                             # (200, tb)

    # Layer 2: (100,200)@(200,tb)
    h = jnp.dot(w2_ref[...], h.astype(bf16),
                preferred_element_type=jnp.float32) + b2_ref[...]
    h = jnp.maximum(h, 0.0)                                             # (100, tb)

    # Layer 3: (20,100)@(100,tb) — kept on MXU (see header note).
    h = jnp.dot(w3_ref[...], h.astype(bf16),
                preferred_element_type=jnp.float32) + b3_ref[...]
    h = jnp.maximum(h, 0.0)                                             # (20, tb)

    # Final Linear(20,1): N=1 matmul wastes the MXU -> VPU mul + sublane reduce.
    z = jnp.sum(h * w4_ref[...], axis=0, keepdims=True) + b4_ref[...]   # (1, tb)
    o_ref[...] = jax.nn.sigmoid(z).astype(o_ref.dtype)                  # lane-dense store


def _pick_tile(batch, tb_max=TB_MAX):
    """Batch tile: multiple of 128, as large as possible to amortize per-step
    overhead, but capped so the grid has >=2 steps whenever the batch allows it
    (lets the 'parallel' grid axis use both TensorCores on v7x)."""
    if batch <= 128:
        return 128
    half = pl.cdiv(batch, 2)
    half = pl.cdiv(half, 128) * 128
    return min(tb_max, half)


def discriminator_forward(x, params, tb=None):
    """x: (B, 64) float32.  params: dict from pack_params().  Eval-mode forward."""
    B = x.shape[0]
    if tb is None:
        tb = _pick_tile(B)
    nb = pl.cdiv(B, tb)

    w1, b1 = params["w1"], params["b1"]
    w2, b2 = params["w2"], params["b2"]
    w3, b3 = params["w3"], params["b3"]
    w4, b4 = params["w4"], params["b4"]

    # Small weights/biases: full tensors stay VMEM-resident; constant index_map
    # means they are not re-DMA'd across grid steps.
    def resident(a):
        return pl.BlockSpec(a.shape, lambda i: (0, 0))

    grid_spec = pl.GridSpec(
        grid=(nb,),
        in_specs=[
            # Native (B, 64) layout; last block may be partial (padded rows are
            # undefined but only feed output lanes that are never written back).
            pl.BlockSpec((tb, D_IN), lambda i: (i, 0)),
            resident(w1), resident(b1),
            resident(w2), resident(b2),
            resident(w3), resident(b3),
            resident(w4), resident(b4),
        ],
        # (1, tb) output block: lane-dense unmasked stores.
        out_specs=pl.BlockSpec((1, tb), lambda i: (0, i)),
    )

    param_bytes = sum(int(a.size) * a.dtype.itemsize
                      for a in (w1, b1, w2, b2, w3, b3, w4, b4))
    cost = pl.CostEstimate(
        flops=2 * B * (D_IN * H1 + H1 * H2 + H2 * H3 + H3 * D_OUT),
        transcendentals=B,  # one exp per sigmoid output
        bytes_accessed=int(x.size) * x.dtype.itemsize + B * 4 + param_bytes,
    )

    out = pl.pallas_call(
        _mlp_kernel,
        out_shape=jax.ShapeDtypeStruct((1, B), jnp.float32),
        grid_spec=grid_spec,
        compiler_params=pltpu.CompilerParams(
            dimension_semantics=("parallel",)),
        cost_estimate=cost,
    )(x, w1, b1, w2, b2, w3, b3, w4, b4)

    return out[0, :].reshape(B, 1)


def init_params(key):
    """Deterministic synthetic parameters in PyTorch layout (out,in) / (out,)."""
    layer_dims = [(D_IN, H1), (H1, H2), (H2, H3), (H3, D_OUT)]
    params = {}
    keys = jax.random.split(key, 2 * len(layer_dims))
    for n, (din, dout) in enumerate(layer_dims, start=1):
        bound = 1.0 / (din ** 0.5)  # mimic nn.Linear default init range
        params[f"w{n}"] = jax.random.uniform(
            keys[2 * (n - 1)], (dout, din), jnp.float32, -bound, bound)
        params[f"b{n}"] = jax.random.uniform(
            keys[2 * (n - 1) + 1], (dout,), jnp.float32, -bound, bound)
    return params


def pack_params(p):
    """Convert PyTorch-layout params to the kernel's storage layout/dtypes."""
    return dict(
        w1=p["w1"].astype(jnp.bfloat16),          # (200, 64)  bf16 MXU operand
        b1=p["b1"].reshape(-1, 1),                # (200, 1)   f32 column bias
        w2=p["w2"].astype(jnp.bfloat16),          # (100, 200)
        b2=p["b2"].reshape(-1, 1),                # (100, 1)
        w3=p["w3"].astype(jnp.bfloat16),          # (20, 100)
        b3=p["b3"].reshape(-1, 1),                # (20, 1)
        w4=p["w4"].T.astype(jnp.float32),         # (20, 1)    f32 column (VPU reduce)
        b4=p["b4"].reshape(1, 1),                 # (1, 1)     f32
    )


def _reference(x, p):
    """Pure-JAX reference with the same bf16-operand / f32-accumulate math."""
    bf16 = jnp.bfloat16
    h = jnp.maximum(jnp.dot(x.astype(bf16), p["w1"].T,
                            preferred_element_type=jnp.float32) + p["b1"].T, 0.0)
    h = jnp.maximum(jnp.dot(h.astype(bf16), p["w2"].T,
                            preferred_element_type=jnp.float32) + p["b2"].T, 0.0)
    h = jnp.maximum(jnp.dot(h.astype(bf16), p["w3"].T,
                            preferred_element_type=jnp.float32) + p["b3"].T, 0.0)
    z = jnp.dot(h, p["w4"], preferred_element_type=jnp.float32) + p["b4"]
    return jax.nn.sigmoid(z)


if __name__ == "__main__":
    key = jax.random.PRNGKey(0)
    k_x, k_p = jax.random.split(key)
    # B=300: small, not a tile multiple (exercises the partial edge block) and
    # large enough that the tile picker produces a 2-step grid (megacore path).
    B = 300
    x = jax.random.normal(k_x, (B, D_IN), jnp.float32)
    params = pack_params(init_params(k_p))

    out = discriminator_forward(x, params)
    out = jax.block_until_ready(out)

    ref = _reference(x, params)
    assert out.shape == (B, 1), out.shape
    err = float(jnp.max(jnp.abs(out - ref)))
    assert err < 2e-3, err
    print("KERNEL_OK")
</pallas_src>

<mosaic_0001>
module attributes {stable_mosaic.version = 11 : i64} {
  func.func @_mlp_kernel(%arg0: i32, %arg1: memref<256x64xf32, #tpu.memory_space<vmem>>, %arg2: memref<200x64xbf16, #tpu.memory_space<vmem>>, %arg3: memref<200x1xf32, #tpu.memory_space<vmem>>, %arg4: memref<100x200xbf16, #tpu.memory_space<vmem>>, %arg5: memref<100x1xf32, #tpu.memory_space<vmem>>, %arg6: memref<20x100xbf16, #tpu.memory_space<vmem>>, %arg7: memref<20x1xf32, #tpu.memory_space<vmem>>, %arg8: memref<20x1xf32, #tpu.memory_space<vmem>>, %arg9: memref<1x1xf32, #tpu.memory_space<vmem>>, %arg10: memref<1x256xf32, #tpu.memory_space<vmem>>) attributes {dimension_semantics = [#tpu.dimension_semantics<parallel>], iteration_bounds = array<i64: 2>, scalar_prefetch = 0 : i64, scratch_operands = 0 : i64, tpu.core_type = #tpu.core_type<tc>, window_params = [{transform_indices = @transform_0, window_bounds = array<i64: 256, 64>}, {pipeline_mode = #tpu.pipeline_mode<synchronous>, transform_indices = @transform_1, window_bounds = array<i64: 200, 64>}, {pipeline_mode = #tpu.pipeline_mode<synchronous>, transform_indices = @transform_2, window_bounds = array<i64: 200, 1>}, {pipeline_mode = #tpu.pipeline_mode<synchronous>, transform_indices = @transform_3, window_bounds = array<i64: 100, 200>}, {pipeline_mode = #tpu.pipeline_mode<synchronous>, transform_indices = @transform_4, window_bounds = array<i64: 100, 1>}, {pipeline_mode = #tpu.pipeline_mode<synchronous>, transform_indices = @transform_5, window_bounds = array<i64: 20, 100>}, {pipeline_mode = #tpu.pipeline_mode<synchronous>, transform_indices = @transform_6, window_bounds = array<i64: 20, 1>}, {pipeline_mode = #tpu.pipeline_mode<synchronous>, transform_indices = @transform_7, window_bounds = array<i64: 20, 1>}, {pipeline_mode = #tpu.pipeline_mode<synchronous>, transform_indices = @transform_8, window_bounds = array<i64: 1, 1>}, {transform_indices = @transform_9, window_bounds = array<i64: 1, 256>}]} {
    %c0 = arith.constant 0 : index
    %c0_0 = arith.constant 0 : index
    %0 = vector.load %arg1[%c0, %c0_0] : memref<256x64xf32, #tpu.memory_space<vmem>>, vector<256x64xf32>
    %1 = arith.truncf %0 : vector<256x64xf32> to vector<256x64xbf16>
    %c0_1 = arith.constant 0 : index
    %c0_2 = arith.constant 0 : index
    %2 = vector.load %arg2[%c0_1, %c0_2] : memref<200x64xbf16, #tpu.memory_space<vmem>>, vector<200x64xbf16>
    %cst = arith.constant dense<0.000000e+00> : vector<200x256xf32>
    %3 = tpu.matmul %2, %1, %cst {dimension_numbers = #tpu.dot_dimension_numbers<[1], [1], [0], [0], [0, 0, 1, 0], [], []>} : vector<200x64xbf16>, vector<256x64xbf16>, vector<200x256xf32> -> vector<200x256xf32>
    %c0_3 = arith.constant 0 : index
    %c0_4 = arith.constant 0 : index
    %4 = vector.load %arg3[%c0_3, %c0_4] : memref<200x1xf32, #tpu.memory_space<vmem>>, vector<200x1xf32>
    %5 = vector.broadcast %4 : vector<200x1xf32> to vector<200x256xf32>
    %6 = arith.addf %3, %5 : vector<200x256xf32>
    %cst_5 = arith.constant 0.000000e+00 : f32
    %7 = vector.broadcast %cst_5 : f32 to vector<200x256xf32>
    %8 = arith.maximumf %6, %7 : vector<200x256xf32>
    %c0_6 = arith.constant 0 : index
    %c0_7 = arith.constant 0 : index
    %9 = vector.load %arg4[%c0_6, %c0_7] : memref<100x200xbf16, #tpu.memory_space<vmem>>, vector<100x200xbf16>
    %10 = arith.truncf %8 : vector<200x256xf32> to vector<200x256xbf16>
    %cst_8 = arith.constant dense<0.000000e+00> : vector<100x256xf32>
    %11 = tpu.matmul %9, %10, %cst_8 {dimension_numbers = #tpu.dot_dimension_numbers<[1], [0], [0], [1], [0, 0, 1, 1], [], []>} : vector<100x200xbf16>, vector<200x256xbf16>, vector<100x256xf32> -> vector<100x256xf32>
    %c0_9 = arith.constant 0 : index
    %c0_10 = arith.constant 0 : index
    %12 = vector.load %arg5[%c0_9, %c0_10] : memref<100x1xf32, #tpu.memory_space<vmem>>, vector<100x1xf32>
    %13 = vector.broadcast %12 : vector<100x1xf32> to vector<100x256xf32>
    %14 = arith.addf %11, %13 : vector<100x256xf32>
    %cst_11 = arith.constant 0.000000e+00 : f32
    %15 = vector.broadcast %cst_11 : f32 to vector<100x256xf32>
    %16 = arith.maximumf %14, %15 : vector<100x256xf32>
    %c0_12 = arith.constant 0 : index
    %c0_13 = arith.constant 0 : index
    %17 = vector.load %arg6[%c0_12, %c0_13] : memref<20x100xbf16, #tpu.memory_space<vmem>>, vector<20x100xbf16>
    %18 = arith.truncf %16 : vector<100x256xf32> to vector<100x256xbf16>
    %cst_14 = arith.constant dense<0.000000e+00> : vector<20x256xf32>
    %19 = tpu.matmul %17, %18, %cst_14 {dimension_numbers = #tpu.dot_dimension_numbers<[1], [0], [0], [1], [0, 0, 1, 1], [], []>} : vector<20x100xbf16>, vector<100x256xbf16>, vector<20x256xf32> -> vector<20x256xf32>
    %c0_15 = arith.constant 0 : index
    %c0_16 = arith.constant 0 : index
    %20 = vector.load %arg7[%c0_15, %c0_16] : memref<20x1xf32, #tpu.memory_space<vmem>>, vector<20x1xf32>
    %21 = vector.broadcast %20 : vector<20x1xf32> to vector<20x256xf32>
    %22 = arith.addf %19, %21 : vector<20x256xf32>
    %cst_17 = arith.constant 0.000000e+00 : f32
    %23 = vector.broadcast %cst_17 : f32 to vector<20x256xf32>
    %24 = arith.maximumf %22, %23 : vector<20x256xf32>
    %c0_18 = arith.constant 0 : index
    %c0_19 = arith.constant 0 : index
    %25 = vector.load %arg8[%c0_18, %c0_19] : memref<20x1xf32, #tpu.memory_space<vmem>>, vector<20x1xf32>
    %26 = vector.broadcast %25 : vector<20x1xf32> to vector<20x256xf32>
    %27 = arith.mulf %24, %26 : vector<20x256xf32>
    %cst_20 = arith.constant dense<0.000000e+00> : vector<256xf32>
    %28 = vector.multi_reduction <add>, %27, %cst_20 [0] : vector<20x256xf32> to vector<256xf32>
    %29 = vector.shape_cast %28 : vector<256xf32> to vector<1x256xf32>
    %c0_21 = arith.constant 0 : index
    %c0_22 = arith.constant 0 : index
    %30 = vector.load %arg9[%c0_21, %c0_22] : memref<1x1xf32, #tpu.memory_space<vmem>>, vector<1x1xf32>
    %31 = vector.broadcast %30 : vector<1x1xf32> to vector<1x256xf32>
    %32 = arith.addf %29, %31 : vector<1x256xf32>
    %33 = arith.negf %32 : vector<1x256xf32>
    %34 = math.exp %33 : vector<1x256xf32>
    %cst_23 = arith.constant 1.000000e+00 : f32
    %35 = vector.broadcast %cst_23 : f32 to vector<1x256xf32>
    %36 = arith.addf %35, %34 : vector<1x256xf32>
    %37 = arith.divf %35, %36 : vector<1x256xf32>
    %c0_24 = arith.constant 0 : index
    %c0_25 = arith.constant 0 : index
    %38 = vector.load %arg10[%c0_24, %c0_25] : memref<1x256xf32, #tpu.memory_space<vmem>>, vector<1x256xf32>
    tpu.vector_store %arg10[%c0_24, %c0_25], %37 {strides = array<i32>} : memref<1x256xf32, #tpu.memory_space<vmem>>, vector<1x256xf32>,
    return
  }
  func.func @transform_0(%arg0: i32) -> (i32, i32) {
    %c0_i32 = arith.constant 0 : i32
    %c0_i32_0 = arith.constant 0 : i32
    return %arg0, %c0_i32 : i32, i32
  }
  func.func @transform_1(%arg0: i32) -> (i32, i32) {
    %c0_i32 = arith.constant 0 : i32
    %c0_i32_0 = arith.constant 0 : i32
    %c0_i32_1 = arith.constant 0 : i32
    return %c0_i32, %c0_i32_0 : i32, i32
  }
  func.func @transform_2(%arg0: i32) -> (i32, i32) {
    %c0_i32 = arith.constant 0 : i32
    %c0_i32_0 = arith.constant 0 : i32
    %c0_i32_1 = arith.constant 0 : i32
    return %c0_i32, %c0_i32_0 : i32, i32
  }
  func.func @transform_3(%arg0: i32) -> (i32, i32) {
    %c0_i32 = arith.constant 0 : i32
    %c0_i32_0 = arith.constant 0 : i32
    %c0_i32_1 = arith.constant 0 : i32
    return %c0_i32, %c0_i32_0 : i32, i32
  }
  func.func @transform_4(%arg0: i32) -> (i32, i32) {
    %c0_i32 = arith.constant 0 : i32
    %c0_i32_0 = arith.constant 0 : i32
    %c0_i32_1 = arith.constant 0 : i32
    return %c0_i32, %c0_i32_0 : i32, i32
  }
  func.func @transform_5(%arg0: i32) -> (i32, i32) {
    %c0_i32 = arith.constant 0 : i32
    %c0_i32_0 = arith.constant 0 : i32
    %c0_i32_1 = arith.constant 0 : i32
    return %c0_i32, %c0_i32_0 : i32, i32
  }
  func.func @transform_6(%arg0: i32) -> (i32, i32) {
    %c0_i32 = arith.constant 0 : i32
    %c0_i32_0 = arith.constant 0 : i32
    %c0_i32_1 = arith.constant 0 : i32
    return %c0_i32, %c0_i32_0 : i32, i32
  }
  func.func @transform_7(%arg0: i32) -> (i32, i32) {
    %c0_i32 = arith.constant 0 : i32
    %c0_i32_0 = arith.constant 0 : i32
    %c0_i32_1 = arith.constant 0 : i32
    return %c0_i32, %c0_i32_0 : i32, i32
  }
  func.func @transform_8(%arg0: i32) -> (i32, i32) {
    %c0_i32 = arith.constant 0 : i32
    %c0_i32_0 = arith.constant 0 : i32
    %c0_i32_1 = arith.constant 0 : i32
    return %c0_i32, %c0_i32_0 : i32, i32
  }
  func.func @transform_9(%arg0: i32) -> (i32, i32) {
    %c0_i32 = arith.constant 0 : i32
    %c0_i32_0 = arith.constant 0 : i32
    return %c0_i32, %arg0 : i32, i32
  }
}

</mosaic_0001>

<llo_original>
// kernel: tpu_custom_call.1
$region0: #{tpu_custom_call.1}
  #allocation0 [shape = 'u32[]', space=smem, size = 0x4, offset = 0x4, fixed_abs, tag = 'smem constant byte address 0x4 - core index']
  #allocation1 [shape = 'u32[144,128]{1,0:T(1,128)}', space=vmem, size = 0x12000, scoped, tag = 'internal scratch']
  #allocation2 [shape = 'f32[1,1]{1,0:T(1,128)S(1)}', space=vmem, size = 0x200, scoped, tag = 'scoped memory for tpu_custom_call.1']
  %s0 = inlined_call_operand.vmem [shape: f32[300,64], index: 0, kind: input, shape index: {}]
  %s1 = inlined_call_operand.vmem [shape: bf16[200,64], index: 1, kind: input, shape index: {}]
  %s2 = inlined_call_operand.vmem [shape: f32[200,1], index: 2, kind: input, shape index: {}]
  %s3 = inlined_call_operand.vmem [shape: bf16[100,200], index: 3, kind: input, shape index: {}]
  %s4 = inlined_call_operand.vmem [shape: f32[100,1], index: 4, kind: input, shape index: {}]
  %s5 = inlined_call_operand.vmem [shape: bf16[20,100], index: 5, kind: input, shape index: {}]
  %s6 = inlined_call_operand.vmem [shape: f32[20,1], index: 6, kind: input, shape index: {}]
  %s7 = inlined_call_operand.vmem [shape: f32[20,1], index: 7, kind: input, shape index: {}]
  %s8 = inlined_call_operand.<no memory space> [shape: f32[1,1], index: 8, kind: input, shape index: {}]
  %s9 = inlined_call_operand.hbm [shape: f32[1,300], index: 9, kind: output, shape index: {}]
  %s10 = sld [smem:[#allocation0]]
  $region69: #{tpu_custom_call.1} parent=0
    _
  %s12 = ssub.s32 1, %s10
  %s13 = scalar_select 0, %s12, %s10
  %v14 = vstv %s8
  %15 = vst [vmem:[#allocation2] sm:$0x1] %v14
  $region1: #{tpu_custom_call.1} parent=0
    #allocation3 [shape = 'u8[2048]{0}', space=vmem, size = 0x800, scoped, tag = 'output window, operand 0']
    #allocation4 [shape = 's32[2]{0}', space=sflag, size = 0x8, scoped, tag = 'scoped memory for tpu_custom_call.1']
    %16 = vsyncpa [#allocation4], 0
    %s17 = scalar_lea.sflag [#allocation4], 1
    %18 = vsyncpa %s17, 0
    loop: start=0, step=1, limit=4
    $region2: #{tpu_custom_call.1} parent=1 // loop_pre_header
      _
    $region3: #{tpu_custom_call.1} parent=1 // loop_header
      %s20 = sphi 0, %s24
      %p21 = scmp.ge.s32.totalorder %s20, 4
      %s30 = sphi 0, %s32
      %s33 = sphi 0, %s30
      %s34 = sphi 0, %s33
      %s50 = sphi 0, %s34
      %s54 = sphi 0, %s54
      %s56 = sphi 0, %s54
      %s57 = sphi 0, %s56
      %s71 = sphi 0, %s57
      %s75 = sphi 0, %s75
      %s77 = sphi 0, %s75
      %s78 = sphi 0, %s77
      %s92 = sphi 0, %s78
      %s96 = sphi 0, %s96
      %s98 = sphi 0, %s96
      %s99 = sphi 0, %s98
      %s113 = sphi 0, %s99
      %s117 = sphi 0, %s117
      %s119 = sphi 0, %s117
      %s120 = sphi 0, %s119
      %s134 = sphi 0, %s120
      %s138 = sphi 0, %s138
      %s140 = sphi 0, %s138
      %s141 = sphi 0, %s140
      %s155 = sphi 0, %s141
      %s159 = sphi 0, %s159
      %s161 = sphi 0, %s159
      %s162 = sphi 0, %s161
      %s176 = sphi 0, %s162
      %s180 = sphi 0, %s180
      %s182 = sphi 0, %s180
      %s183 = sphi 0, %s182
      %s197 = sphi 0, %s183
      %s201 = sphi 0, %s201
      %s203 = sphi 0, %s201
      %s204 = sphi 0, %s203
      %s218 = sphi 0, %s204
      %s224 = sphi 0, %s226
      %s227 = sphi 0, %s224
      %s228 = sphi 0, %s227
      %s244 = sphi 0, %s228
    $region4: #{tpu_custom_call.1} parent=1 // loop_header_branch
      %23 = sbr.rel (%p21) target = $region8
    $region5: #{tpu_custom_call.1} parent=1 // loop_body
      %s25 = ssub.s32 %s20, 1
      %s26 = ssub.s32 %s20, 2
      %s27 = sadd.s32 %s20, 1
      %s28 = ssub.s32 %s20, %s27
      %p29 = scmp.eq.s32.totalorder %s28, 0
      %s31 = sadd.s32 %s30, 1
      %s32 = scalar_select %p29, %s30, %s31
      %p35 = pneg %p29
      %p36 = scmp.eq.s32.totalorder %s20, 1
      %p37 = por %p35, %p36
      %p38 = scmp.ne.s32.totalorder %s30, %s33
      %p39 = scmp.eq.s32.totalorder %s20, 0
      %p40 = por %p38, %p39
      %p41 = scmp.ne.s32.totalorder %s30, %s33
      %p42 = scmp.eq.s32.totalorder %s25, 1
      %p43 = por %p41, %p42
      %p44 = scmp.ne.s32.totalorder %s33, %s34
      %p45 = scmp.eq.s32.totalorder %s25, 0
      %p46 = por %p44, %p45
      %p47 = scmp.ne.s32.totalorder %s33, %s34
      %p48 = scmp.eq.s32.totalorder %s26, 1
      %p49 = por %p47, %p48
      %p51 = scmp.ne.s32.totalorder %s34, %s50
      %p52 = scmp.eq.s32.totalorder %s26, 0
      %p53 = por %p51, %p52
      %s55 = sadd.s32 %s54, 1
      %p58 = scmp.eq.s32.totalorder %s20, 1
      %p59 = scmp.ne.s32.totalorder %s54, %s56
      %p60 = scmp.eq.s32.totalorder %s20, 0
      %p61 = por %p59, %p60
      %p62 = scmp.ne.s32.totalorder %s54, %s56
      %p63 = scmp.eq.s32.totalorder %s25, 1
      %p64 = por %p62, %p63
      %p65 = scmp.ne.s32.totalorder %s56, %s57
      %p66 = scmp.eq.s32.totalorder %s25, 0
      %p67 = por %p65, %p66
      %p68 = scmp.ne.s32.totalorder %s56, %s57
      %p69 = scmp.eq.s32.totalorder %s26, 1
      %p70 = por %p68, %p69
      %p72 = scmp.ne.s32.totalorder %s57, %s71
      %p73 = scmp.eq.s32.totalorder %s26, 0
      %p74 = por %p72, %p73
      %s76 = sadd.s32 %s75, 1
      %p79 = scmp.eq.s32.totalorder %s20, 1
      %p80 = scmp.ne.s32.totalorder %s75, %s77
      %p81 = scmp.eq.s32.totalorder %s20, 0
      %p82 = por %p80, %p81
      %p83 = scmp.ne.s32.totalorder %s75, %s77
      %p84 = scmp.eq.s32.totalorder %s25, 1
      %p85 = por %p83, %p84
      %p86 = scmp.ne.s32.totalorder %s77, %s78
      %p87 = scmp.eq.s32.totalorder %s25, 0
      %p88 = por %p86, %p87
      %p89 = scmp.ne.s32.totalorder %s77, %s78
      %p90 = scmp.eq.s32.totalorder %s26, 1
      %p91 = por %p89, %p90
      %p93 = scmp.ne.s32.totalorder %s78, %s92
      %p94 = scmp.eq.s32.totalorder %s26, 0
      %p95 = por %p93, %p94
      %s97 = sadd.s32 %s96, 1
      %p100 = scmp.eq.s32.totalorder %s20, 1
      %p101 = scmp.ne.s32.totalorder %s96, %s98
      %p102 = scmp.eq.s32.totalorder %s20, 0
      %p103 = por %p101, %p102
      %p104 = scmp.ne.s32.totalorder %s96, %s98
      %p105 = scmp.eq.s32.totalorder %s25, 1
      %p106 = por %p104, %p105
      %p107 = scmp.ne.s32.totalorder %s98, %s99
      %p108 = scmp.eq.s32.totalorder %s25, 0
      %p109 = por %p107, %p108
      %p110 = scmp.ne.s32.totalorder %s98, %s99
      %p111 = scmp.eq.s32.totalorder %s26, 1
      %p112 = por %p110, %p111
      %p114 = scmp.ne.s32.totalorder %s99, %s113
      %p115 = scmp.eq.s32.totalorder %s26, 0
      %p116 = por %p114, %p115
      %s118 = sadd.s32 %s117, 1
      %p121 = scmp.eq.s32.totalorder %s20, 1
      %p122 = scmp.ne.s32.totalorder %s117, %s119
      %p123 = scmp.eq.s32.totalorder %s20, 0
      %p124 = por %p122, %p123
      %p125 = scmp.ne.s32.totalorder %s117, %s119
      %p126 = scmp.eq.s32.totalorder %s25, 1
      %p127 = por %p125, %p126
      %p128 = scmp.ne.s32.totalorder %s119, %s120
      %p129 = scmp.eq.s32.totalorder %s25, 0
      %p130 = por %p128, %p129
      %p131 = scmp.ne.s32.totalorder %s119, %s120
      %p132 = scmp.eq.s32.totalorder %s26, 1
      %p133 = por %p131, %p132
      %p135 = scmp.ne.s32.totalorder %s120, %s134
      %p136 = scmp.eq.s32.totalorder %s26, 0
      %p137 = por %p135, %p136
      %s139 = sadd.s32 %s138, 1
      %p142 = scmp.eq.s32.totalorder %s20, 1
      %p143 = scmp.ne.s32.totalorder %s138, %s140
      %p144 = scmp.eq.s32.totalorder %s20, 0
      %p145 = por %p143, %p144
      %p146 = scmp.ne.s32.totalorder %s138, %s140
      %p147 = scmp.eq.s32.totalorder %s25, 1
      %p148 = por %p146, %p147
      %p149 = scmp.ne.s32.totalorder %s140, %s141
      %p150 = scmp.eq.s32.totalorder %s25, 0
      %p151 = por %p149, %p150
      %p152 = scmp.ne.s32.totalorder %s140, %s141
      %p153 = scmp.eq.s32.totalorder %s26, 1
      %p154 = por %p152, %p153
      %p156 = scmp.ne.s32.totalorder %s141, %s155
      %p157 = scmp.eq.s32.totalorder %s26, 0
      %p158 = por %p156, %p157
      %s160 = sadd.s32 %s159, 1
      %p163 = scmp.eq.s32.totalorder %s20, 1
      %p164 = scmp.ne.s32.totalorder %s159, %s161
      %p165 = scmp.eq.s32.totalorder %s20, 0
      %p166 = por %p164, %p165
      %p167 = scmp.ne.s32.totalorder %s159, %s161
      %p168 = scmp.eq.s32.totalorder %s25, 1
      %p169 = por %p167, %p168
      %p170 = scmp.ne.s32.totalorder %s161, %s162
      %p171 = scmp.eq.s32.totalorder %s25, 0
      %p172 = por %p170, %p171
      %p173 = scmp.ne.s32.totalorder %s161, %s162
      %p174 = scmp.eq.s32.totalorder %s26, 1
      %p175 = por %p173, %p174
      %p177 = scmp.ne.s32.totalorder %s162, %s176
      %p178 = scmp.eq.s32.totalorder %s26, 0
      %p179 = por %p177, %p178
      %s181 = sadd.s32 %s180, 1
      %p184 = scmp.eq.s32.totalorder %s20, 1
      %p185 = scmp.ne.s32.totalorder %s180, %s182
      %p186 = scmp.eq.s32.totalorder %s20, 0
      %p187 = por %p185, %p186
      %p188 = scmp.ne.s32.totalorder %s180, %s182
      %p189 = scmp.eq.s32.totalorder %s25, 1
      %p190 = por %p188, %p189
      %p191 = scmp.ne.s32.totalorder %s182, %s183
      %p192 = scmp.eq.s32.totalorder %s25, 0
      %p193 = por %p191, %p192
      %p194 = scmp.ne.s32.totalorder %s182, %s183
      %p195 = scmp.eq.s32.totalorder %s26, 1
      %p196 = por %p194, %p195
      %p198 = scmp.ne.s32.totalorder %s183, %s197
      %p199 = scmp.eq.s32.totalorder %s26, 0
      %p200 = por %p198, %p199
      %s202 = sadd.s32 %s201, 1
      %p205 = scmp.eq.s32.totalorder %s20, 1
      %p206 = scmp.ne.s32.totalorder %s201, %s203
      %p207 = scmp.eq.s32.totalorder %s20, 0
      %p208 = por %p206, %p207
      %p209 = scmp.ne.s32.totalorder %s201, %s203
      %p210 = scmp.eq.s32.totalorder %s25, 1
      %p211 = por %p209, %p210
      %p212 = scmp.ne.s32.totalorder %s203, %s204
      %p213 = scmp.eq.s32.totalorder %s25, 0
      %p214 = por %p212, %p213
      %p215 = scmp.ne.s32.totalorder %s203, %s204
      %p216 = scmp.eq.s32.totalorder %s26, 1
      %p217 = por %p215, %p216
      %p219 = scmp.ne.s32.totalorder %s204, %s218
      %p220 = scmp.eq.s32.totalorder %s26, 0
      %p221 = por %p219, %p220
      %s222 = ssub.s32 %s20, %s27
      %p223 = scmp.eq.s32.totalorder %s222, 0
      %s225 = sadd.s32 %s224, 1
      %s226 = scalar_select %p223, %s224, %s225
      %p229 = pneg %p223
      %p230 = scmp.eq.s32.totalorder %s20, 1
      %p231 = por %p229, %p230
      %p232 = scmp.ne.s32.totalorder %s224, %s227
      %p233 = scmp.eq.s32.totalorder %s20, 0
      %p234 = por %p232, %p233
      %p235 = scmp.ne.s32.totalorder %s224, %s227
      %p236 = scmp.eq.s32.totalorder %s25, 1
      %p237 = por %p235, %p236
      %p238 = scmp.ne.s32.totalorder %s227, %s228
      %p239 = scmp.eq.s32.totalorder %s25, 0
      %p240 = por %p238, %p239
      %p241 = scmp.ne.s32.totalorder %s227, %s228
      %p242 = scmp.eq.s32.totalorder %s26, 1
      %p243 = por %p241, %p242
      %p245 = scmp.ne.s32.totalorder %s228, %s244
      %p246 = scmp.eq.s32.totalorder %s26, 0
      %p247 = por %p245, %p246
      %p248 = scmp.le.s32.totalorder 1, %s20
      %p249 = scmp.lt.s32.totalorder %s20, 3
      %p250 = pnand %p248, %p249
      %p251 = pneg %p250
      // Predicated region
      $region9: #{tpu_custom_call.1} parent=5 // pred_check
        _
      $region10: #{tpu_custom_call.1} parent=5 // pred_check_branch
        %253 = sbr.rel (%p250) target = $region12
      $region11: #{tpu_custom_call.1} parent=5 // pred_region
        %s254 = ssub.s32 %s20, 1
        // Predicated region
        $region13: #{tpu_custom_call.1} parent=11 // pred_check
          %p255 = pneg %p67
        $region14: #{tpu_custom_call.1} parent=11 // pred_check_branch
          %257 = sbr.rel (%p255) target = $region16
        $region15: #{tpu_custom_call.1} parent=11 // pred_region
          _
        $region16: #{tpu_custom_call.1} parent=11 // pred_fallthru
          _
        // Predicated region
        $region17: #{tpu_custom_call.1} parent=11 // pred_check
          %p258 = pneg %p88
        $region18: #{tpu_custom_call.1} parent=11 // pred_check_branch
          %260 = sbr.rel (%p258) target = $region20
        $region19: #{tpu_custom_call.1} parent=11 // pred_region
          _
        $region20: #{tpu_custom_call.1} parent=11 // pred_fallthru
          _
        // Predicated region
        $region21: #{tpu_custom_call.1} parent=11 // pred_check
          %p261 = pneg %p109
        $region22: #{tpu_custom_call.1} parent=11 // pred_check_branch
          %263 = sbr.rel (%p261) target = $region24
        $region23: #{tpu_custom_call.1} parent=11 // pred_region
          _
        $region24: #{tpu_custom_call.1} parent=11 // pred_fallthru
          _
        // Predicated region
        $region25: #{tpu_custom_call.1} parent=11 // pred_check
          %p264 = pneg %p130
        $region26: #{tpu_custom_call.1} parent=11 // pred_check_branch
          %266 = sbr.rel (%p264) target = $region28
        $region27: #{tpu_custom_call.1} parent=11 // pred_region
          _
        $region28: #{tpu_custom_call.1} parent=11 // pred_fallthru
          _
        // Predicated region
        $region29: #{tpu_custom_call.1} parent=11 // pred_check
          %p267 = pneg %p151
        $region30: #{tpu_custom_call.1} parent=11 // pred_check_branch
          %269 = sbr.rel (%p267) target = $region32
        $region31: #{tpu_custom_call.1} parent=11 // pred_region
          _
        $region32: #{tpu_custom_call.1} parent=11 // pred_fallthru
          _
        // Predicated region
        $region33: #{tpu_custom_call.1} parent=11 // pred_check
          %p270 = pneg %p172
        $region34: #{tpu_custom_call.1} parent=11 // pred_check_branch
          %272 = sbr.rel (%p270) target = $region36
        $region35: #{tpu_custom_call.1} parent=11 // pred_region
          _
        $region36: #{tpu_custom_call.1} parent=11 // pred_fallthru
          _
        // Predicated region
        $region37: #{tpu_custom_call.1} parent=11 // pred_check
          %p273 = pneg %p193
        $region38: #{tpu_custom_call.1} parent=11 // pred_check_branch
          %275 = sbr.rel (%p273) target = $region40
        $region39: #{tpu_custom_call.1} parent=11 // pred_region
          _
        $region40: #{tpu_custom_call.1} parent=11 // pred_fallthru
          _
        // Predicated region
        $region41: #{tpu_custom_call.1} parent=11 // pred_check
          %p276 = pneg %p214
        $region42: #{tpu_custom_call.1} parent=11 // pred_check_branch
          %278 = sbr.rel (%p276) target = $region44
        $region43: #{tpu_custom_call.1} parent=11 // pred_region
          _
        $region44: #{tpu_custom_call.1} parent=11 // pred_fallthru
          _
      $region12: #{tpu_custom_call.1} parent=5 // pred_fallthru
        _
      %p279 = scmp.lt.s32.totalorder %s20, 2
      // Predicated region
      $region45: #{tpu_custom_call.1} parent=5 // pred_check
        %p280 = pneg %p279
      $region46: #{tpu_custom_call.1} parent=5 // pred_check_branch
        %282 = sbr.rel (%p280) target = $region48
      $region47: #{tpu_custom_call.1} parent=5 // pred_region
        // Predicated region
        $region49: #{tpu_custom_call.1} parent=47 // pred_check
          %p283 = pneg %p40
        $region50: #{tpu_custom_call.1} parent=47 // pred_check_branch
          %285 = sbr.rel (%p283) target = $region52
        $region51: #{tpu_custom_call.1} parent=47 // pred_region
          %s286 = smul.u32 32, %s20
          %s287 = ssub.s32 38, %s286
          %p288 = scmp.lt.s32.totalorder %s287, 32
          %s289 = scalar_select %p288, %s287, 32
          %s290 = smul.u32 128, %s289
          %p291 = scmp.lt.s32.totalorder %s286, 37
          %s292 = scalar_select %p291, %s286, 37
          %s293 = smul.addr %s292, 8
          %s294 = scalar_lea.vmem %s0, %s293
          %s295 = smul.u32 32, %s20
          %s296 = ssub.s32 38, %s295
          %p297 = scmp.lt.s32.totalorder %s296, 32
          %s298 = scalar_select %p297, %s296, 32
          %s299 = smul.u32 128, %s298
        $region52: #{tpu_custom_call.1} parent=47 // pred_fallthru
          _
      $region48: #{tpu_custom_call.1} parent=5 // pred_fallthru
        _
      %p300 = scmp.le.s32.totalorder 1, %s20
      %p301 = scmp.lt.s32.totalorder %s20, 3
      %p302 = pnand %p300, %p301
      %p303 = pneg %p302
      // Predicated region
      $region53: #{tpu_custom_call.1} parent=5 // pred_check
        _
      $region54: #{tpu_custom_call.1} parent=5 // pred_check_branch
        %305 = sbr.rel (%p302) target = $region56
      $region55: #{tpu_custom_call.1} parent=5 // pred_region
        %s306 = ssub.s32 %s20, 1
        %s307 = smul.u32 32, %s25
        %s308 = ssub.s32 38, %s307
        %p309 = scmp.lt.s32.totalorder %s308, 32
        %s310 = scalar_select %p309, %s308, 32
        %s311 = smul.u32 128, %s310
        %p312 = scmp.lt.s32.totalorder %s307, 37
        %s313 = scalar_select %p312, %s307, 37
        %s314 = smul.addr %s313, 8
        %s315 = scalar_lea.vmem %s0, %s314
        %p316 = pneg %p46
        %p317 = pneg %p43
        %p318 = pneg %p67
        %p319 = pneg %p64
        %p320 = pneg %p88
        %p321 = pneg %p85
        %p322 = pneg %p109
        %p323 = pneg %p106
        %p324 = pneg %p130
        %p325 = pneg %p127
        %p326 = pneg %p151
        %p327 = pneg %p148
        %p328 = pneg %p172
        %p329 = pneg %p169
        %p330 = pneg %p193
        %p331 = pneg %p190
        %p332 = pneg %p214
        %p333 = pneg %p211
        %p334 = pneg %p240
        %p335 = pneg %p237
        %s336 = sand.u32 %s227, 1
        %s337 = scalar_lea.sflag [#allocation4], %s336
        %s338 = sand.u32 %s227, 1
        %s339 = smul.addr %s338, 2
        %s340 = scalar_lea.vmem [#allocation3], %s339
        %s341 = smul.u32 32, %s25
        %s342 = ssub.s32 38, %s341
        %p343 = scmp.lt.s32.totalorder %s342, 32
        %s344 = scalar_select %p343, %s342, 32
        %s345 = smul.u32 128, %s344
        %p346 = scmp.lt.s32.totalorder %s341, 37
        %s347 = scalar_select %p346, %s341, 37
        %s348 = smul.addr %s347, 8
        %s349 = scalar_lea.vmem %s0, %s348
        %s350 = smul.u32 32, %s25
        %s351 = ssub.s32 38, %s350
        %p352 = scmp.lt.s32.totalorder %s351, 32
        %s353 = scalar_select %p352, %s351, 32
        %s354 = smul.u32 128, %s353
        %s355 = smul.u32 2, %s25
        %s356 = ssub.s32 3, %s355
        %p357 = scmp.lt.s32.totalorder %s356, 2
        %s358 = scalar_select %p357, %s356, 2
        %s359 = smul.u32 16, %s358
        %v361 = vld [vmem:[%s349] sm:$0xff]
        %v362 = vld [vmem:[%s349 + $0x8] sm:$0xff]
        %v363 = vld [vmem:[%s349 + $0x10] sm:$0xff]
        %v364 = vld [vmem:[%s349 + $0x18] sm:$0xff]
        %v365 = vld [vmem:[%s349 + $0x20] sm:$0xff]
        %v366 = vld [vmem:[%s349 + $0x28] sm:$0xff]
        %v367 = vld [vmem:[%s349 + $0x30] sm:$0xff]
        %v368 = vld [vmem:[%s349 + $0x38] sm:$0xff]
        %v369 = vld [vmem:[%s349 + $0x40] sm:$0xff]
        %v370 = vld [vmem:[%s349 + $0x48] sm:$0xff]
        %v371 = vld [vmem:[%s349 + $0x50] sm:$0xff]
        %v372 = vld [vmem:[%s349 + $0x58] sm:$0xff]
        %v373 = vld [vmem:[%s349 + $0x60] sm:$0xff]
        %v374 = vld [vmem:[%s349 + $0x68] sm:$0xff]
        %v375 = vld [vmem:[%s349 + $0x70] sm:$0xff]
        %v376 = vld [vmem:[%s349 + $0x78] sm:$0xff]
        %v377 = vld [vmem:[%s349 + $0x80] sm:$0xff]
        %v378 = vld [vmem:[%s349 + $0x88] sm:$0xff]
        %v379 = vld [vmem:[%s349 + $0x90] sm:$0xff]
        %v380 = vld [vmem:[%s349 + $0x98] sm:$0xff]
        %v381 = vld [vmem:[%s349 + $0xa0] sm:$0xff]
        %v382 = vld [vmem:[%s349 + $0xa8] sm:$0xff]
        %v383 = vld [vmem:[%s349 + $0xb0] sm:$0xff]
        %v384 = vld [vmem:[%s349 + $0xb8] sm:$0xff]
        %v385 = vld [vmem:[%s349 + $0xc0] sm:$0xff]
        %v386 = vld [vmem:[%s349 + $0xc8] sm:$0xff]
        %v387 = vld [vmem:[%s349 + $0xd0] sm:$0xff]
        %v388 = vld [vmem:[%s349 + $0xd8] sm:$0xff]
        %v389 = vld [vmem:[%s349 + $0xe0] sm:$0xff]
        %v390 = vld [vmem:[%s349 + $0xe8] sm:$0xff]
        %v391 = vld [vmem:[%s349 + $0xf0] sm:$0xff]
        %v392 = vld [vmem:[%s349 + $0xf8] sm:$0xff]
        %v393 = vpack.c.bf16 %v362, %v361
        %v394 = vpack.c.bf16 %v364, %v363
        %v395 = vpack.c.bf16 %v366, %v365
        %v396 = vpack.c.bf16 %v368, %v367
        %v397 = vpack.c.bf16 %v370, %v369
        %v398 = vpack.c.bf16 %v372, %v371
        %v399 = vpack.c.bf16 %v374, %v373
        %v400 = vpack.c.bf16 %v376, %v375
        %v401 = vpack.c.bf16 %v378, %v377
        %v402 = vpack.c.bf16 %v380, %v379
        %v403 = vpack.c.bf16 %v382, %v381
        %v404 = vpack.c.bf16 %v384, %v383
        %v405 = vpack.c.bf16 %v386, %v385
        %v406 = vpack.c.bf16 %v388, %v387
        %v407 = vpack.c.bf16 %v390, %v389
        %v408 = vpack.c.bf16 %v392, %v391
        %v409 = vld [vmem:[%s1] sm:$0xf]
        %v410 = vld [vmem:[%s1 + $0x4] sm:$0xf]
        %v411 = vld [vmem:[%s1 + $0x8] sm:$0xf]
        %v412 = vld [vmem:[%s1 + $0xc] sm:$0xf]
        %v413 = vld [vmem:[%s1 + $0x10] sm:$0xf]
        %v414 = vld [vmem:[%s1 + $0x14] sm:$0xf]
        %v415 = vld [vmem:[%s1 + $0x18] sm:$0xf]
        %v416 = vld [vmem:[%s1 + $0x1c] sm:$0xf]
        %v417 = vld [vmem:[%s1 + $0x20] sm:$0xf]
        %v418 = vld [vmem:[%s1 + $0x24] sm:$0xf]
        %v419 = vld [vmem:[%s1 + $0x28] sm:$0xf]
        %v420 = vld [vmem:[%s1 + $0x2c] sm:$0xf]
        %v421 = vld [vmem:[%s1 + $0x30] sm:$0xf]
        %v422 = vld [vmem:[%s1 + $0x34] sm:$0xf]
        %v423 = vld [vmem:[%s1 + $0x38] sm:$0xf]
        %v424 = vld [vmem:[%s1 + $0x3c] sm:$0xf]
        %v425 = vld [vmem:[%s1 + $0x40] sm:$0xf]
        %v426 = vld [vmem:[%s1 + $0x44] sm:$0xf]
        %v427 = vld [vmem:[%s1 + $0x48] sm:$0xf]
        %v428 = vld [vmem:[%s1 + $0x4c] sm:$0xf]
        %v429 = vld [vmem:[%s1 + $0x50] sm:$0xf]
        %v430 = vld [vmem:[%s1 + $0x54] sm:$0xf]
        %v431 = vld [vmem:[%s1 + $0x58] sm:$0xf]
        %v432 = vld [vmem:[%s1 + $0x5c] sm:$0xf]
        %v433 = vld [vmem:[%s1 + $0x60] sm:$0xf]
        %v434 = vld [vmem:[%s2] sm:$0xff]
        %v435 = vld [vmem:[%s2 + $0x8] sm:$0xff]
        %v436 = vld [vmem:[%s2 + $0x10] sm:$0xff]
        %v437 = vld [vmem:[%s2 + $0x18] sm:$0xff]
        %v438 = vld [vmem:[%s2 + $0x20] sm:$0xff]
        %v439 = vld [vmem:[%s2 + $0x28] sm:$0xff]
        %v440 = vld [vmem:[%s2 + $0x30] sm:$0xff]
        %v441 = vld [vmem:[%s2 + $0x38] sm:$0xff]
        %v442 = vld [vmem:[%s2 + $0x40] sm:$0xff]
        %v443 = vld [vmem:[%s2 + $0x48] sm:$0xff]
        %v444 = vld [vmem:[%s2 + $0x50] sm:$0xff]
        %v445 = vld [vmem:[%s2 + $0x58] sm:$0xff]
        %v446 = vld [vmem:[%s2 + $0x60] sm:$0xff]
        %v447 = vld [vmem:[%s2 + $0x68] sm:$0xff]
        %v448 = vld [vmem:[%s2 + $0x70] sm:$0xff]
        %v449 = vld [vmem:[%s2 + $0x78] sm:$0xff]
        %v450 = vld [vmem:[%s2 + $0x80] sm:$0xff]
        %v451 = vld [vmem:[%s2 + $0x88] sm:$0xff]
        %v452 = vld [vmem:[%s2 + $0x90] sm:$0xff]
        %v453 = vld [vmem:[%s2 + $0x98] sm:$0xff]
        %v454 = vld [vmem:[%s2 + $0xa0] sm:$0xff]
        %v455 = vld [vmem:[%s2 + $0xa8] sm:$0xff]
        %v456 = vld [vmem:[%s2 + $0xb0] sm:$0xff]
        %v457 = vld [vmem:[%s2 + $0xb8] sm:$0xff]
        %v458 = vld [vmem:[%s2 + $0xc0] sm:$0xff]
        %460 = vset.pattern.permute.xlu0 0
        %461 = vperm.xlu0 %460, %v434
        %v462 = vpop.permute.xlu0 %461
        %465 = vset.pattern.permute.xlu0 0
        %466 = vperm.xlu0 %465, %v435
        %v467 = vpop.permute.xlu0 %466
        %470 = vset.pattern.permute.xlu0 0
        %471 = vperm.xlu0 %470, %v436
        %v472 = vpop.permute.xlu0 %471
        %475 = vset.pattern.permute.xlu0 0
        %476 = vperm.xlu0 %475, %v437
        %v477 = vpop.permute.xlu0 %476
        %480 = vset.pattern.permute.xlu0 0
        %481 = vperm.xlu0 %480, %v438
        %v482 = vpop.permute.xlu0 %481
        %485 = vset.pattern.permute.xlu0 0
        %486 = vperm.xlu0 %485, %v439
        %v487 = vpop.permute.xlu0 %486
        %490 = vset.pattern.permute.xlu0 0
        %491 = vperm.xlu0 %490, %v440
        %v492 = vpop.permute.xlu0 %491
        %495 = vset.pattern.permute.xlu0 0
        %496 = vperm.xlu0 %495, %v441
        %v497 = vpop.permute.xlu0 %496
        %500 = vset.pattern.permute.xlu0 0
        %501 = vperm.xlu0 %500, %v442
        %v502 = vpop.permute.xlu0 %501
        %505 = vset.pattern.permute.xlu0 0
        %506 = vperm.xlu0 %505, %v443
        %v507 = vpop.permute.xlu0 %506
        %510 = vset.pattern.permute.xlu0 0
        %511 = vperm.xlu0 %510, %v444
        %v512 = vpop.permute.xlu0 %511
        %515 = vset.pattern.permute.xlu0 0
        %516 = vperm.xlu0 %515, %v445
        %v517 = vpop.permute.xlu0 %516
        %520 = vset.pattern.permute.xlu0 0
        %521 = vperm.xlu0 %520, %v446
        %v522 = vpop.permute.xlu0 %521
        %525 = vset.pattern.permute.xlu0 0
        %526 = vperm.xlu0 %525, %v447
        %v527 = vpop.permute.xlu0 %526
        %530 = vset.pattern.permute.xlu0 0
        %531 = vperm.xlu0 %530, %v448
        %v532 = vpop.permute.xlu0 %531
        %535 = vset.pattern.permute.xlu0 0
        %536 = vperm.xlu0 %535, %v449
        %v537 = vpop.permute.xlu0 %536
        %540 = vset.pattern.permute.xlu0 0
        %541 = vperm.xlu0 %540, %v450
        %v542 = vpop.permute.xlu0 %541
        %545 = vset.pattern.permute.xlu0 0
        %546 = vperm.xlu0 %545, %v451
        %v547 = vpop.permute.xlu0 %546
        %550 = vset.pattern.permute.xlu0 0
        %551 = vperm.xlu0 %550, %v452
        %v552 = vpop.permute.xlu0 %551
        %555 = vset.pattern.permute.xlu0 0
        %556 = vperm.xlu0 %555, %v453
        %v557 = vpop.permute.xlu0 %556
        %560 = vset.pattern.permute.xlu0 0
        %561 = vperm.xlu0 %560, %v454
        %v562 = vpop.permute.xlu0 %561
        %565 = vset.pattern.permute.xlu0 0
        %566 = vperm.xlu0 %565, %v455
        %v567 = vpop.permute.xlu0 %566
        %570 = vset.pattern.permute.xlu0 0
        %571 = vperm.xlu0 %570, %v456
        %v572 = vpop.permute.xlu0 %571
        %575 = vset.pattern.permute.xlu0 0
        %576 = vperm.xlu0 %575, %v457
        %v577 = vpop.permute.xlu0 %576
        %580 = vset.pattern.permute.xlu0 0
        %581 = vperm.xlu0 %580, %v458
        %v582 = vpop.permute.xlu0 %581
        %v609 = vunpack.c.l.b16 %v409
        %v610 = vunpack.c.l.b16 %v410
        %v611 = vunpack.c.l.b16 %v411
        %v612 = vunpack.c.l.b16 %v412
        %v613 = vunpack.c.l.b16 %v413
        %v614 = vunpack.c.l.b16 %v414
        %v615 = vunpack.c.l.b16 %v415
        %v616 = vunpack.c.l.b16 %v416
        %v617 = vunpack.c.l.b16 %v417
        %v618 = vunpack.c.l.b16 %v418
        %v619 = vunpack.c.l.b16 %v419
        %v620 = vunpack.c.l.b16 %v420
        %v621 = vunpack.c.l.b16 %v421
        %v622 = vunpack.c.l.b16 %v422
        %v623 = vunpack.c.l.b16 %v423
        %v624 = vunpack.c.l.b16 %v424
        %v625 = vunpack.c.l.b16 %v425
        %v626 = vunpack.c.l.b16 %v426
        %v627 = vunpack.c.l.b16 %v427
        %v628 = vunpack.c.l.b16 %v428
        %v629 = vunpack.c.l.b16 %v429
        %v630 = vunpack.c.l.b16 %v430
        %v631 = vunpack.c.l.b16 %v431
        %v632 = vunpack.c.l.b16 %v432
        %v633 = vunpack.c.l.b16 %v433
        %v634 = vpack.c.b16 %v610, %v609
        %v635 = vpack.c.b16 %v612, %v611
        %v636 = vpack.c.b16 %v614, %v613
        %v637 = vpack.c.b16 %v616, %v615
        %v638 = vpack.c.b16 %v618, %v617
        %v639 = vpack.c.b16 %v620, %v619
        %v640 = vpack.c.b16 %v622, %v621
        %v641 = vpack.c.b16 %v624, %v623
        %v642 = vpack.c.b16 %v626, %v625
        %v643 = vpack.c.b16 %v628, %v627
        %v644 = vpack.c.b16 %v630, %v629
        %v645 = vpack.c.b16 %v632, %v631
        %v646 = vpack.c.b16 %v633, %v633
        %vm647 = vcmask 523264
        %v649 = vsel %vm647, %v634, 0
        %v652 = vsel %vm647, %v635, 0
        %v655 = vsel %vm647, %v636, 0
        %v658 = vsel %vm647, %v637, 0
        %v661 = vsel %vm647, %v638, 0
        %v664 = vsel %vm647, %v639, 0
        %v667 = vsel %vm647, %v640, 0
        %v670 = vsel %vm647, %v641, 0
        %v673 = vsel %vm647, %v642, 0
        %v676 = vsel %vm647, %v643, 0
        %v679 = vsel %vm647, %v644, 0
        %v682 = vsel %vm647, %v645, 0
        %v685 = vsel %vm647, %v646, 0
        %v688 = vsel %vm647, %v393, 0
        %v691 = vsel %vm647, %v394, 0
        %v694 = vsel %vm647, %v395, 0
        %v697 = vsel %vm647, %v396, 0
        %v700 = vsel %vm647, %v397, 0
        %v703 = vsel %vm647, %v398, 0
        %v706 = vsel %vm647, %v399, 0
        %v709 = vsel %vm647, %v400, 0
        %v712 = vsel %vm647, %v401, 0
        %v715 = vsel %vm647, %v402, 0
        %v718 = vsel %vm647, %v403, 0
        %v721 = vsel %vm647, %v404, 0
        %v724 = vsel %vm647, %v405, 0
        %v727 = vsel %vm647, %v406, 0
        %v730 = vsel %vm647, %v407, 0
        %v733 = vsel %vm647, %v408, 0
        %735 = vmatprep.subr.bf16.mxu0 0
        %736 = vmatpush1.bf16.xpose.msra.mxu0 %v688
        %737 = vmatprep.subr.bf16.mxu0 0
        %738 = vmatpush1.bf16.xpose.msra.mxu0 %v691
        %739 = vmatprep.subr.bf16.mxu0 0
        %740 = vmatpush1.bf16.xpose.msra.mxu0 %v694
        %741 = vmatprep.subr.bf16.mxu0 0
        %742 = vmatpush1.bf16.xpose.msra.mxu0 %v697
        %743 = vmatprep.subr.bf16.mxu0 0
        %744 = vmatpush1.bf16.xpose.msra.mxu0 %v700
        %745 = vmatprep.subr.bf16.mxu0 0
        %746 = vmatpush1.bf16.xpose.msra.mxu0 %v703
        %747 = vmatprep.subr.bf16.mxu0 0
        %748 = vmatpush1.bf16.xpose.msra.mxu0 %v706
        %749 = vmatprep.subr.bf16.mxu0 0
        %750 = vmatpush1.bf16.xpose.msra.mxu0 %v709
        %751 = vmatprep.subr.bf16.mxu0 0
        %752 = vmatpush1.bf16.xpose.msra.mxu0 %v712
        %753 = vmatprep.subr.bf16.mxu0 0
        %754 = vmatpush1.bf16.xpose.msra.mxu0 %v715
        %755 = vmatprep.subr.bf16.mxu0 0
        %756 = vmatpush1.bf16.xpose.msra.mxu0 %v718
        %757 = vmatprep.subr.bf16.mxu0 0
        %758 = vmatpush1.bf16.xpose.msra.mxu0 %v721
        %759 = vmatprep.subr.bf16.mxu0 0
        %760 = vmatpush1.bf16.xpose.msra.mxu0 %v724
        %761 = vmatprep.subr.bf16.mxu0 0
        %762 = vmatpush1.bf16.xpose.msra.mxu0 %v727
        %763 = vmatprep.subr.bf16.mxu0 0
        %764 = vmatpush1.bf16.xpose.msra.mxu0 %v730
        %765 = vmatprep.subr.bf16.mxu0 0
        %766 = vmatpush1.bf16.xpose.msra.mxu0 %v733
        %767 = vmatprep.mubr.bf16.mxu0 0
        %768 = vmatmul.mubr.bf16.gmra.mrb[0].mxu0 %v649
        %v769 = vpop.f32.mrb[0].mxu0
        %v770 = vadd.f32 %v462, %v769
        %v771 = vpop.f32.mrb[0].mxu0
        %v772 = vadd.f32 %v462, %v771
        %v773 = vpop.f32.mrb[0].mxu0
        %v774 = vadd.f32 %v467, %v773
        %v775 = vpop.f32.mrb[0].mxu0
        %v776 = vadd.f32 %v467, %v775
        %777 = vmatprep.mubr.bf16.mxu0 0
        %778 = vmatmul.mubr.bf16.gmra.mrb[0].mxu0 %v652
        %v779 = vpop.f32.mrb[0].mxu0
        %v780 = vadd.f32 %v472, %v779
        %v781 = vpop.f32.mrb[0].mxu0
        %v782 = vadd.f32 %v472, %v781
        %v783 = vpop.f32.mrb[0].mxu0
        %v784 = vadd.f32 %v477, %v783
        %v785 = vpop.f32.mrb[0].mxu0
        %v786 = vadd.f32 %v477, %v785
        %787 = vmatprep.mubr.bf16.mxu0 0
        %788 = vmatmul.mubr.bf16.gmra.mrb[0].mxu0 %v655
        %v789 = vpop.f32.mrb[0].mxu0
        %v790 = vadd.f32 %v482, %v789
        %v791 = vpop.f32.mrb[0].mxu0
        %v792 = vadd.f32 %v482, %v791
        %v793 = vpop.f32.mrb[0].mxu0
        %v794 = vadd.f32 %v487, %v793
        %v795 = vpop.f32.mrb[0].mxu0
        %v796 = vadd.f32 %v487, %v795
        %797 = vmatprep.mubr.bf16.mxu0 0
        %798 = vmatmul.mubr.bf16.gmra.mrb[0].mxu0 %v658
        %v799 = vpop.f32.mrb[0].mxu0
        %v800 = vadd.f32 %v492, %v799
        %v801 = vpop.f32.mrb[0].mxu0
        %v802 = vadd.f32 %v492, %v801
        %v803 = vpop.f32.mrb[0].mxu0
        %v804 = vadd.f32 %v497, %v803
        %v805 = vpop.f32.mrb[0].mxu0
        %v806 = vadd.f32 %v497, %v805
        %807 = vmatprep.mubr.bf16.mxu0 0
        %808 = vmatmul.mubr.bf16.gmra.mrb[0].mxu0 %v661
        %v809 = vpop.f32.mrb[0].mxu0
        %v810 = vadd.f32 %v502, %v809
        %v811 = vpop.f32.mrb[0].mxu0
        %v812 = vadd.f32 %v502, %v811
        %v813 = vpop.f32.mrb[0].mxu0
        %v814 = vadd.f32 %v507, %v813
        %v815 = vpop.f32.mrb[0].mxu0
        %v816 = vadd.f32 %v507, %v815
        %817 = vmatprep.mubr.bf16.mxu0 0
        %818 = vmatmul.mubr.bf16.gmra.mrb[0].mxu0 %v664
        %v819 = vpop.f32.mrb[0].mxu0
        %v820 = vadd.f32 %v512, %v819
        %v821 = vpop.f32.mrb[0].mxu0
        %v822 = vadd.f32 %v512, %v821
        %v823 = vpop.f32.mrb[0].mxu0
        %v824 = vadd.f32 %v517, %v823
        %v825 = vpop.f32.mrb[0].mxu0
        %v826 = vadd.f32 %v517, %v825
        %827 = vmatprep.mubr.bf16.mxu0 0
        %828 = vmatmul.mubr.bf16.gmra.mrb[0].mxu0 %v667
        %v829 = vpop.f32.mrb[0].mxu0
        %v830 = vadd.f32 %v522, %v829
        %v831 = vpop.f32.mrb[0].mxu0
        %v832 = vadd.f32 %v522, %v831
        %v833 = vpop.f32.mrb[0].mxu0
        %v834 = vadd.f32 %v527, %v833
        %v835 = vpop.f32.mrb[0].mxu0
        %v836 = vadd.f32 %v527, %v835
        %837 = vmatprep.mubr.bf16.mxu0 0
        %838 = vmatmul.mubr.bf16.gmra.mrb[0].mxu0 %v670
        %v839 = vpop.f32.mrb[0].mxu0
        %v840 = vadd.f32 %v532, %v839
        %v841 = vpop.f32.mrb[0].mxu0
        %v842 = vadd.f32 %v532, %v841
        %v843 = vpop.f32.mrb[0].mxu0
        %v844 = vadd.f32 %v537, %v843
        %v845 = vpop.f32.mrb[0].mxu0
        %v846 = vadd.f32 %v537, %v845
        %847 = vmatprep.mubr.bf16.mxu0 0
        %848 = vmatmul.mubr.bf16.gmra.mrb[0].mxu0 %v673
        %v849 = vpop.f32.mrb[0].mxu0
        %v850 = vadd.f32 %v542, %v849
        %v851 = vpop.f32.mrb[0].mxu0
        %v852 = vadd.f32 %v542, %v851
        %v853 = vpop.f32.mrb[0].mxu0
        %v854 = vadd.f32 %v547, %v853
        %v855 = vpop.f32.mrb[0].mxu0
        %v856 = vadd.f32 %v547, %v855
        %857 = vmatprep.mubr.bf16.mxu0 0
        %858 = vmatmul.mubr.bf16.gmra.mrb[0].mxu0 %v676
        %v859 = vpop.f32.mrb[0].mxu0
        %v860 = vadd.f32 %v552, %v859
        %v861 = vpop.f32.mrb[0].mxu0
        %v862 = vadd.f32 %v552, %v861
        %v863 = vpop.f32.mrb[0].mxu0
        %v864 = vadd.f32 %v557, %v863
        %v865 = vpop.f32.mrb[0].mxu0
        %v866 = vadd.f32 %v557, %v865
        %867 = vmatprep.mubr.bf16.mxu0 0
        %868 = vmatmul.mubr.bf16.gmra.mrb[0].mxu0 %v679
        %v869 = vpop.f32.mrb[0].mxu0
        %v870 = vadd.f32 %v562, %v869
        %v871 = vpop.f32.mrb[0].mxu0
        %v872 = vadd.f32 %v562, %v871
        %v873 = vpop.f32.mrb[0].mxu0
        %v874 = vadd.f32 %v567, %v873
        %v875 = vpop.f32.mrb[0].mxu0
        %v876 = vadd.f32 %v567, %v875
        %877 = vmatprep.mubr.bf16.mxu0 0
        %878 = vmatmul.mubr.bf16.gmra.mrb[0].mxu0 %v682
        %v879 = vpop.f32.mrb[0].mxu0
        %v880 = vadd.f32 %v572, %v879
        %v881 = vpop.f32.mrb[0].mxu0
        %v882 = vadd.f32 %v572, %v881
        %v883 = vpop.f32.mrb[0].mxu0
        %v884 = vadd.f32 %v577, %v883
        %v885 = vpop.f32.mrb[0].mxu0
        %v886 = vadd.f32 %v577, %v885
        %887 = vmatprep.mubr.bf16.mxu0 0
        %888 = vmatmul.mubr.bf16.gmra.mrb[0].mxu0 %v685
        %v889 = vpop.f32.mrb[0].mxu0
        %v890 = vadd.f32 %v582, %v889
        %v891 = vpop.f32.mrb[0].mxu0
        %v892 = vadd.f32 %v582, %v891
        %v893 = vpop.f32.mrb[0].mxu0
        %v894 = vpop.f32.mrb[0].mxu0
        %895 = vdwg.mxu0
        %v896 = vmax.f32 %v770, 0.0
        %v897 = vmax.f32 %v772, 0.0
        %v898 = vmax.f32 %v774, 0.0
        %v899 = vmax.f32 %v776, 0.0
        %v900 = vmax.f32 %v780, 0.0
        %v901 = vmax.f32 %v782, 0.0
        %v902 = vmax.f32 %v784, 0.0
        %v903 = vmax.f32 %v786, 0.0
        %v904 = vmax.f32 %v790, 0.0
        %v905 = vmax.f32 %v792, 0.0
        %v906 = vmax.f32 %v794, 0.0
        %v907 = vmax.f32 %v796, 0.0
        %v908 = vmax.f32 %v800, 0.0
        %v909 = vmax.f32 %v802, 0.0
        %v910 = vmax.f32 %v804, 0.0
        %v911 = vmax.f32 %v806, 0.0
        %v912 = vmax.f32 %v810, 0.0
        %v913 = vmax.f32 %v812, 0.0
        %v914 = vmax.f32 %v814, 0.0
        %v915 = vmax.f32 %v816, 0.0
        %v916 = vmax.f32 %v820, 0.0
        %v917 = vmax.f32 %v822, 0.0
        %v918 = vmax.f32 %v824, 0.0
        %v919 = vmax.f32 %v826, 0.0
        %v920 = vmax.f32 %v830, 0.0
        %v921 = vmax.f32 %v832, 0.0
        %v922 = vmax.f32 %v834, 0.0
        %v923 = vmax.f32 %v836, 0.0
        %v924 = vmax.f32 %v840, 0.0
        %v925 = vmax.f32 %v842, 0.0
        %v926 = vmax.f32 %v844, 0.0
        %v927 = vmax.f32 %v846, 0.0
        %v928 = vmax.f32 %v850, 0.0
        %v929 = vmax.f32 %v852, 0.0
        %v930 = vmax.f32 %v854, 0.0
        %v931 = vmax.f32 %v856, 0.0
        %v932 = vmax.f32 %v860, 0.0
        %v933 = vmax.f32 %v862, 0.0
        %v934 = vmax.f32 %v864, 0.0
        %v935 = vmax.f32 %v866, 0.0
        %v936 = vmax.f32 %v870, 0.0
        %v937 = vmax.f32 %v872, 0.0
        %v938 = vmax.f32 %v874, 0.0
        %v939 = vmax.f32 %v876, 0.0
        %v940 = vmax.f32 %v880, 0.0
        %v941 = vmax.f32 %v882, 0.0
        %v942 = vmax.f32 %v884, 0.0
        %v943 = vmax.f32 %v886, 0.0
        %v944 = vmax.f32 %v890, 0.0
        %v945 = vmax.f32 %v892, 0.0
        %v946 = vld [vmem:[%s3] sm:$0xff]
        %v947 = vld [vmem:[%s3 + $0x8] sm:$0xff]
        %v948 = vld [vmem:[%s3 + $0x10] sm:$0xff]
        %v949 = vld [vmem:[%s3 + $0x18] sm:$0xff]
        %v950 = vld [vmem:[%s3 + $0x20] sm:$0xff]
        %v951 = vld [vmem:[%s3 + $0x28] sm:$0xff]
        %v952 = vld [vmem:[%s3 + $0x30] sm:$0xff]
        %v953 = vld [vmem:[%s3 + $0x38] sm:$0xff]
        %v954 = vld [vmem:[%s3 + $0x40] sm:$0xff]
        %v955 = vld [vmem:[%s3 + $0x48] sm:$0xff]
        %v956 = vld [vmem:[%s3 + $0x50] sm:$0xff]
        %v957 = vld [vmem:[%s3 + $0x58] sm:$0xff]
        %v958 = vld [vmem:[%s3 + $0x60] sm:$0x33]
        %v959 = vpack.c.bf16 %v898, %v896
        %v960 = vpack.c.bf16 %v899, %v897
        %v961 = vpack.c.bf16 %v902, %v900
        %v962 = vpack.c.bf16 %v903, %v901
        %v963 = vpack.c.bf16 %v906, %v904
        %v964 = vpack.c.bf16 %v907, %v905
        %v965 = vpack.c.bf16 %v910, %v908
        %v966 = vpack.c.bf16 %v911, %v909
        %v967 = vpack.c.bf16 %v914, %v912
        %v968 = vpack.c.bf16 %v915, %v913
        %v969 = vpack.c.bf16 %v918, %v916
        %v970 = vpack.c.bf16 %v919, %v917
        %v971 = vpack.c.bf16 %v922, %v920
        %v972 = vpack.c.bf16 %v923, %v921
        %v973 = vpack.c.bf16 %v926, %v924
        %v974 = vpack.c.bf16 %v927, %v925
        %v975 = vpack.c.bf16 %v930, %v928
        %v976 = vpack.c.bf16 %v931, %v929
        %v977 = vpack.c.bf16 %v934, %v932
        %v978 = vpack.c.bf16 %v935, %v933
        %v979 = vpack.c.bf16 %v938, %v936
        %v980 = vpack.c.bf16 %v939, %v937
        %v981 = vpack.c.bf16 %v942, %v940
        %v982 = vpack.c.bf16 %v943, %v941
        %v983 = vpack.c.bf16 %v944, %v944
        %v984 = vpack.c.bf16 %v945, %v945
        %v985 = vld [vmem:[%s4] sm:$0xff]
        %v986 = vld [vmem:[%s4 + $0x8] sm:$0xff]
        %v987 = vld [vmem:[%s4 + $0x10] sm:$0xff]
        %v988 = vld [vmem:[%s4 + $0x18] sm:$0xff]
        %v989 = vld [vmem:[%s4 + $0x20] sm:$0xff]
        %v990 = vld [vmem:[%s4 + $0x28] sm:$0xff]
        %v991 = vld [vmem:[%s4 + $0x30] sm:$0xff]
        %v992 = vld [vmem:[%s4 + $0x38] sm:$0xff]
        %v993 = vld [vmem:[%s4 + $0x40] sm:$0xff]
        %v994 = vld [vmem:[%s4 + $0x48] sm:$0xff]
        %v995 = vld [vmem:[%s4 + $0x50] sm:$0xff]
        %v996 = vld [vmem:[%s4 + $0x58] sm:$0xff]
        %v997 = vld [vmem:[%s4 + $0x60] sm:$0xf]
        %999 = vset.pattern.permute.xlu0 0
        %1000 = vperm.xlu0 %999, %v985
        %v1001 = vpop.permute.xlu0 %1000
        %1004 = vset.pattern.permute.xlu0 0
        %1005 = vperm.xlu0 %1004, %v986
        %v1006 = vpop.permute.xlu0 %1005
        %1009 = vset.pattern.permute.xlu0 0
        %1010 = vperm.xlu0 %1009, %v987
        %v1011 = vpop.permute.xlu0 %1010
        %1014 = vset.pattern.permute.xlu0 0
        %1015 = vperm.xlu0 %1014, %v988
        %v1016 = vpop.permute.xlu0 %1015
        %1019 = vset.pattern.permute.xlu0 0
        %1020 = vperm.xlu0 %1019, %v989
        %v1021 = vpop.permute.xlu0 %1020
        %1024 = vset.pattern.permute.xlu0 0
        %1025 = vperm.xlu0 %1024, %v990
        %v1026 = vpop.permute.xlu0 %1025
        %1029 = vset.pattern.permute.xlu0 0
        %1030 = vperm.xlu0 %1029, %v991
        %v1031 = vpop.permute.xlu0 %1030
        %1034 = vset.pattern.permute.xlu0 0
        %1035 = vperm.xlu0 %1034, %v992
        %v1036 = vpop.permute.xlu0 %1035
        %1039 = vset.pattern.permute.xlu0 0
        %1040 = vperm.xlu0 %1039, %v993
        %v1041 = vpop.permute.xlu0 %1040
        %1044 = vset.pattern.permute.xlu0 0
        %1045 = vperm.xlu0 %1044, %v994
        %v1046 = vpop.permute.xlu0 %1045
        %1049 = vset.pattern.permute.xlu0 0
        %1050 = vperm.xlu0 %1049, %v995
        %v1051 = vpop.permute.xlu0 %1050
        %1054 = vset.pattern.permute.xlu0 0
        %1055 = vperm.xlu0 %1054, %v996
        %v1056 = vpop.permute.xlu0 %1055
        %1059 = vset.pattern.permute.xlu0 0
        %1060 = vperm.xlu0 %1059, %v997
        %v1061 = vpop.permute.xlu0 %1060
        %v1076 = vunpack.c.l.b16 %v946
        %v1077 = vunpack.c.h.b16 %v946
        %v1078 = vunpack.c.l.b16 %v947
        %v1079 = vunpack.c.h.b16 %v947
        %v1080 = vunpack.c.l.b16 %v948
        %v1081 = vunpack.c.h.b16 %v948
        %v1082 = vunpack.c.l.b16 %v949
        %v1083 = vunpack.c.h.b16 %v949
        %v1084 = vunpack.c.l.b16 %v950
        %v1085 = vunpack.c.h.b16 %v950
        %v1086 = vunpack.c.l.b16 %v951
        %v1087 = vunpack.c.h.b16 %v951
        %v1088 = vunpack.c.l.b16 %v952
        %v1089 = vunpack.c.h.b16 %v952
        %v1090 = vunpack.c.l.b16 %v953
        %v1091 = vunpack.c.h.b16 %v953
        %v1092 = vunpack.c.l.b16 %v954
        %v1093 = vunpack.c.h.b16 %v954
        %v1094 = vunpack.c.l.b16 %v955
        %v1095 = vunpack.c.h.b16 %v955
        %v1096 = vunpack.c.l.b16 %v956
        %v1097 = vunpack.c.h.b16 %v956
        %v1098 = vunpack.c.l.b16 %v957
        %v1099 = vunpack.c.h.b16 %v957
        %v1100 = vunpack.c.l.b16 %v958
        %v1101 = vunpack.c.h.b16 %v958
        %v1102 = vpack.c.b16 %v1078, %v1076
        %v1103 = vpack.c.b16 %v1079, %v1077
        %v1104 = vpack.c.b16 %v1082, %v1080
        %v1105 = vpack.c.b16 %v1083, %v1081
        %v1106 = vpack.c.b16 %v1086, %v1084
        %v1107 = vpack.c.b16 %v1087, %v1085
        %v1108 = vpack.c.b16 %v1090, %v1088
        %v1109 = vpack.c.b16 %v1091, %v1089
        %v1110 = vpack.c.b16 %v1094, %v1092
        %v1111 = vpack.c.b16 %v1095, %v1093
        %v1112 = vpack.c.b16 %v1098, %v1096
        %v1113 = vpack.c.b16 %v1099, %v1097
        %v1114 = vpack.c.b16 %v1100, %v1100
        %v1115 = vpack.c.b16 %v1101, %v1101
        %vm1123 = vcmask 588800
        %v1125 = vsel %vm1123, %v1103, 0
        %v1128 = vsel %vm1123, %v1105, 0
        %v1131 = vsel %vm1123, %v1107, 0
        %v1134 = vsel %vm1123, %v1109, 0
        %v1137 = vsel %vm1123, %v1111, 0
        %v1140 = vsel %vm1123, %v1113, 0
        %v1143 = vsel %vm1123, %v1115, 0
        %vm1145 = vcmask 1043456
        %v1147 = vsel %vm1145, %v983, 0
        %v1150 = vsel %vm1145, %v984, 0
        %1152 = vmatprep.subr.bf16.mxu0 %v960
        %1153 = vmatpush1.bf16.msra.mxu0 %v959
        %1154 = vmatprep.subr.bf16.mxu0 %v962
        %1155 = vmatpush1.bf16.msra.mxu0 %v961
        %1156 = vmatprep.subr.bf16.mxu0 %v964
        %1157 = vmatpush1.bf16.msra.mxu0 %v963
        %1158 = vmatprep.subr.bf16.mxu0 %v966
        %1159 = vmatpush1.bf16.msra.mxu0 %v965
        %1160 = vmatprep.subr.bf16.mxu0 %v968
        %1161 = vmatpush1.bf16.msra.mxu0 %v967
        %1162 = vmatprep.subr.bf16.mxu0 %v970
        %1163 = vmatpush1.bf16.msra.mxu0 %v969
        %1164 = vmatprep.subr.bf16.mxu0 %v972
        %1165 = vmatpush1.bf16.msra.mxu0 %v971
        %1166 = vmatprep.subr.bf16.mxu0 %v974
        %1167 = vmatpush1.bf16.msra.mxu0 %v973
        %1168 = vmatprep.subr.bf16.mxu0 %v976
        %1169 = vmatpush1.bf16.msra.mxu0 %v975
        %1170 = vmatprep.subr.bf16.mxu0 %v978
        %1171 = vmatpush1.bf16.msra.mxu0 %v977
        %1172 = vmatprep.subr.bf16.mxu0 %v980
        %1173 = vmatpush1.bf16.msra.mxu0 %v979
        %1174 = vmatprep.subr.bf16.mxu0 %v982
        %1175 = vmatpush1.bf16.msra.mxu0 %v981
        %1176 = vmatprep.subr.bf16.mxu0 %v1150
        %1177 = vmatpush1.bf16.msra.mxu0 %v1147
        %1178 = vmatprep.subr.bf16.mxu0 0
        %1179 = vmatpush1.bf16.msra.mxu0 0
        %1180 = vmatprep.subr.bf16.mxu0 0
        %1181 = vmatpush1.bf16.msra.mxu0 0
        %1182 = vmatprep.subr.bf16.mxu0 0
        %1183 = vmatpush1.bf16.msra.mxu0 0
        %1184 = vmatprep.mubr.bf16.mxu0 %v1125
        %1185 = vmatmul.mubr.bf16.gmra.mrb[0].mxu0 %v1102
        %v1186 = vpop.f32.mrb[0].mxu0
        %v1187 = vadd.f32 %v1001, %v1186
        %v1188 = vpop.f32.mrb[0].mxu0
        %v1189 = vadd.f32 %v1001, %v1188
        %v1190 = vpop.f32.mrb[0].mxu0
        %v1191 = vadd.f32 %v1006, %v1190
        %v1192 = vpop.f32.mrb[0].mxu0
        %v1193 = vadd.f32 %v1006, %v1192
        %1194 = vmatprep.mubr.bf16.mxu0 %v1128
        %1195 = vmatmul.mubr.bf16.gmra.mrb[0].mxu0 %v1104
        %v1196 = vpop.f32.mrb[0].mxu0
        %v1197 = vadd.f32 %v1011, %v1196
        %v1198 = vpop.f32.mrb[0].mxu0
        %v1199 = vadd.f32 %v1011, %v1198
        %v1200 = vpop.f32.mrb[0].mxu0
        %v1201 = vadd.f32 %v1016, %v1200
        %v1202 = vpop.f32.mrb[0].mxu0
        %v1203 = vadd.f32 %v1016, %v1202
        %1204 = vmatprep.mubr.bf16.mxu0 %v1131
        %1205 = vmatmul.mubr.bf16.gmra.mrb[0].mxu0 %v1106
        %v1206 = vpop.f32.mrb[0].mxu0
        %v1207 = vadd.f32 %v1021, %v1206
        %v1208 = vpop.f32.mrb[0].mxu0
        %v1209 = vadd.f32 %v1021, %v1208
        %v1210 = vpop.f32.mrb[0].mxu0
        %v1211 = vadd.f32 %v1026, %v1210
        %v1212 = vpop.f32.mrb[0].mxu0
        %v1213 = vadd.f32 %v1026, %v1212
        %1214 = vmatprep.mubr.bf16.mxu0 %v1134
        %1215 = vmatmul.mubr.bf16.gmra.mrb[0].mxu0 %v1108
        %v1216 = vpop.f32.mrb[0].mxu0
        %v1217 = vadd.f32 %v1031, %v1216
        %v1218 = vpop.f32.mrb[0].mxu0
        %v1219 = vadd.f32 %v1031, %v1218
        %v1220 = vpop.f32.mrb[0].mxu0
        %v1221 = vadd.f32 %v1036, %v1220
        %v1222 = vpop.f32.mrb[0].mxu0
        %v1223 = vadd.f32 %v1036, %v1222
        %1224 = vmatprep.mubr.bf16.mxu0 %v1137
        %1225 = vmatmul.mubr.bf16.gmra.mrb[0].mxu0 %v1110
        %v1226 = vpop.f32.mrb[0].mxu0
        %v1227 = vadd.f32 %v1041, %v1226
        %v1228 = vpop.f32.mrb[0].mxu0
        %v1229 = vadd.f32 %v1041, %v1228
        %v1230 = vpop.f32.mrb[0].mxu0
        %v1231 = vadd.f32 %v1046, %v1230
        %v1232 = vpop.f32.mrb[0].mxu0
        %v1233 = vadd.f32 %v1046, %v1232
        %1234 = vmatprep.mubr.bf16.mxu0 %v1140
        %1235 = vmatmul.mubr.bf16.gmra.mrb[0].mxu0 %v1112
        %v1236 = vpop.f32.mrb[0].mxu0
        %v1237 = vadd.f32 %v1051, %v1236
        %v1238 = vpop.f32.mrb[0].mxu0
        %v1239 = vadd.f32 %v1051, %v1238
        %v1240 = vpop.f32.mrb[0].mxu0
        %v1241 = vadd.f32 %v1056, %v1240
        %v1242 = vpop.f32.mrb[0].mxu0
        %v1243 = vadd.f32 %v1056, %v1242
        %1244 = vmatprep.mubr.bf16.mxu0 %v1143
        %1245 = vmatmul.mubr.bf16.gmra.mrb[0].mxu0 %v1114
        %v1246 = vpop.f32.mrb[0].mxu0
        %v1247 = vadd.f32 %v1061, %v1246
        %v1248 = vpop.f32.mrb[0].mxu0
        %v1249 = vadd.f32 %v1061, %v1248
        %v1250 = vpop.f32.mrb[0].mxu0
        %v1251 = vpop.f32.mrb[0].mxu0
        %1252 = vdwg.mxu0
        %v1253 = vmax.f32 %v1187, 0.0
        %v1254 = vmax.f32 %v1189, 0.0
        %v1255 = vmax.f32 %v1191, 0.0
        %v1256 = vmax.f32 %v1193, 0.0
        %v1257 = vmax.f32 %v1197, 0.0
        %v1258 = vmax.f32 %v1199, 0.0
        %v1259 = vmax.f32 %v1201, 0.0
        %v1260 = vmax.f32 %v1203, 0.0
        %v1261 = vmax.f32 %v1207, 0.0
        %v1262 = vmax.f32 %v1209, 0.0
        %v1263 = vmax.f32 %v1211, 0.0
        %v1264 = vmax.f32 %v1213, 0.0
        %v1265 = vmax.f32 %v1217, 0.0
        %v1266 = vmax.f32 %v1219, 0.0
        %v1267 = vmax.f32 %v1221, 0.0
        %v1268 = vmax.f32 %v1223, 0.0
        %v1269 = vmax.f32 %v1227, 0.0
        %v1270 = vmax.f32 %v1229, 0.0
        %v1271 = vmax.f32 %v1231, 0.0
        %v1272 = vmax.f32 %v1233, 0.0
        %v1273 = vmax.f32 %v1237, 0.0
        %v1274 = vmax.f32 %v1239, 0.0
        %v1275 = vmax.f32 %v1241, 0.0
        %v1276 = vmax.f32 %v1243, 0.0
        %v1277 = vmax.f32 %v1247, 0.0
        %v1278 = vmax.f32 %v1249, 0.0
        %v1279 = vld [vmem:[%s5] sm:$0xf]
        %v1280 = vld [vmem:[%s5 + $0x4] sm:$0xf]
        %v1281 = vld [vmem:[%s5 + $0x8] sm:$0x3]
        %v1282 = vpack.c.bf16 %v1255, %v1253
        %v1283 = vpack.c.bf16 %v1256, %v1254
        %v1284 = vpack.c.bf16 %v1259, %v1257
        %v1285 = vpack.c.bf16 %v1260, %v1258
        %v1286 = vpack.c.bf16 %v1263, %v1261
        %v1287 = vpack.c.bf16 %v1264, %v1262
        %v1288 = vpack.c.bf16 %v1267, %v1265
        %v1289 = vpack.c.bf16 %v1268, %v1266
        %v1290 = vpack.c.bf16 %v1271, %v1269
        %v1291 = vpack.c.bf16 %v1272, %v1270
        %v1292 = vpack.c.bf16 %v1275, %v1273
        %v1293 = vpack.c.bf16 %v1276, %v1274
        %v1294 = vpack.c.bf16 %v1277, %v1277
        %v1295 = vpack.c.bf16 %v1278, %v1278
        %v1296 = vld [vmem:[%s6] sm:$0xff]
        %v1297 = vld [vmem:[%s6 + $0x8] sm:$0xff]
        %v1298 = vld [vmem:[%s6 + $0x10] sm:$0xf]
        %1300 = vset.pattern.permute.xlu0 0
        %1301 = vperm.xlu0 %1300, %v1296
        %v1302 = vpop.permute.xlu0 %1301
        %1305 = vset.pattern.permute.xlu0 0
        %1306 = vperm.xlu0 %1305, %v1297
        %v1307 = vpop.permute.xlu0 %1306
        %1310 = vset.pattern.permute.xlu0 0
        %1311 = vperm.xlu0 %1310, %v1298
        %v1312 = vpop.permute.xlu0 %1311
        %v1317 = vunpack.c.l.b16 %v1279
        %v1318 = vunpack.c.l.b16 %v1280
        %v1319 = vunpack.c.l.b16 %v1281
        %v1320 = vpack.c.b16 %v1318, %v1317
        %v1321 = vpack.c.b16 %v1319, %v1319
        %vm1322 = vcmask 818176
        %v1324 = vsel %vm1322, %v1320, 0
        %v1327 = vsel %vm1322, %v1321, 0
        %vm1329 = vcmask 1041408
        %v1331 = vsel %vm1329, %v1294, 0
        %v1334 = vsel %vm1329, %v1295, 0
        %1336 = vmatprep.subr.bf16.mxu0 %v1283
        %1337 = vmatpush1.bf16.msra.mxu0 %v1282
        %1338 = vmatprep.subr.bf16.mxu0 %v1285
        %1339 = vmatpush1.bf16.msra.mxu0 %v1284
        %1340 = vmatprep.subr.bf16.mxu0 %v1287
        %1341 = vmatpush1.bf16.msra.mxu0 %v1286
        %1342 = vmatprep.subr.bf16.mxu0 %v1289
        %1343 = vmatpush1.bf16.msra.mxu0 %v1288
        %1344 = vmatprep.subr.bf16.mxu0 %v1291
        %1345 = vmatpush1.bf16.msra.mxu0 %v1290
        %1346 = vmatprep.subr.bf16.mxu0 %v1293
        %1347 = vmatpush1.bf16.msra.mxu0 %v1292
        %1348 = vmatprep.subr.bf16.mxu0 %v1334
        %1349 = vmatpush1.bf16.msra.mxu0 %v1331
        %1350 = vmatprep.subr.bf16.mxu0 0
        %1351 = vmatpush1.bf16.msra.mxu0 0
        %1352 = vmatprep.subr.bf16.mxu0 0
        %1353 = vmatpush1.bf16.msra.mxu0 0
        %1354 = vmatprep.subr.bf16.mxu0 0
        %1355 = vmatpush1.bf16.msra.mxu0 0
        %1356 = vmatprep.subr.bf16.mxu0 0
        %1357 = vmatpush1.bf16.msra.mxu0 0
        %1358 = vmatprep.subr.bf16.mxu0 0
        %1359 = vmatpush1.bf16.msra.mxu0 0
        %1360 = vmatprep.subr.bf16.mxu0 0
        %1361 = vmatpush1.bf16.msra.mxu0 0
        %1362 = vmatprep.subr.bf16.mxu0 0
        %1363 = vmatpush1.bf16.msra.mxu0 0
        %1364 = vmatprep.subr.bf16.mxu0 0
        %1365 = vmatpush1.bf16.msra.mxu0 0
        %1366 = vmatprep.subr.bf16.mxu0 0
        %1367 = vmatpush1.bf16.msra.mxu0 0
        %1368 = vmatprep.mubr.bf16.mxu0 0
        %1369 = vmatmul.mubr.bf16.gmra.mrb[0].mxu0 %v1324
        %v1370 = vpop.f32.mrb[0].mxu0
        %v1371 = vadd.f32 %v1302, %v1370
        %v1372 = vpop.f32.mrb[0].mxu0
        %v1373 = vadd.f32 %v1302, %v1372
        %v1374 = vpop.f32.mrb[0].mxu0
        %v1375 = vadd.f32 %v1307, %v1374
        %v1376 = vpop.f32.mrb[0].mxu0
        %v1377 = vadd.f32 %v1307, %v1376
        %1378 = vmatprep.mubr.bf16.mxu0 0
        %1379 = vmatmul.mubr.bf16.gmra.mrb[0].mxu0 %v1327
        %v1380 = vpop.f32.mrb[0].mxu0
        %v1381 = vadd.f32 %v1312, %v1380
        %v1382 = vpop.f32.mrb[0].mxu0
        %v1383 = vadd.f32 %v1312, %v1382
        %v1384 = vpop.f32.mrb[0].mxu0
        %v1385 = vpop.f32.mrb[0].mxu0
        %1386 = vdwg.mxu0
        %v1387 = vmax.f32 %v1371, 0.0
        %v1388 = vmax.f32 %v1373, 0.0
        %v1389 = vmax.f32 %v1375, 0.0
        %v1390 = vmax.f32 %v1377, 0.0
        %v1391 = vmax.f32 %v1381, 0.0
        %v1392 = vmax.f32 %v1383, 0.0
        %v1393 = vld [vmem:[%s7] sm:$0xff]
        %v1394 = vld [vmem:[%s7 + $0x8] sm:$0xff]
        %v1395 = vld [vmem:[%s7 + $0x10] sm:$0xf]
        %1397 = vset.pattern.permute.xlu0 0
        %1398 = vperm.xlu0 %1397, %v1393
        %v1399 = vpop.permute.xlu0 %1398
        %1402 = vset.pattern.permute.xlu0 0
        %1403 = vperm.xlu0 %1402, %v1394
        %v1404 = vpop.permute.xlu0 %1403
        %1407 = vset.pattern.permute.xlu0 0
        %1408 = vperm.xlu0 %1407, %v1395
        %v1409 = vpop.permute.xlu0 %1408
        %v1411 = vmul.f32 %v1387, %v1399
        %v1412 = vmul.f32 %v1388, %v1399
        %v1413 = vmul.f32 %v1389, %v1404
        %v1414 = vmul.f32 %v1390, %v1404
        %v1415 = vmul.f32 %v1391, %v1409
        %v1416 = vmul.f32 %v1392, %v1409
        %v1417 = vadd.f32 %v1411, %v1413
        %v1418 = vsel %vm1145, %v1415, 0.0
        %v1419 = vadd.f32 %v1417, %v1418
        %v1420 = vrot.slane %v1419, 4
        %v1421 = vadd.f32 %v1419, %v1420
        %v1422 = vrot.slane %v1421, 2
        %v1423 = vadd.f32 %v1421, %v1422
        %v1424 = vrot.slane %v1423, 1
        %v1425 = vadd.f32 %v1423, %v1424
        %v1426 = vadd.f32 %v1412, %v1414
        %v1427 = vsel %vm1145, %v1416, 0.0
        %v1428 = vadd.f32 %v1426, %v1427
        %v1429 = vrot.slane %v1428, 4
        %v1430 = vadd.f32 %v1428, %v1429
        %v1431 = vrot.slane %v1430, 2
        %v1432 = vadd.f32 %v1430, %v1431
        %v1433 = vrot.slane %v1432, 1
        %v1434 = vadd.f32 %v1432, %v1433
        %v1435 = vld [vmem:[#allocation2] sm:$0x1]
        %1437 = vset.pattern.permute.xlu0 0
        %1438 = vperm.xlu0 %1437, %v1435
        %v1439 = vpop.permute.xlu0 %1438
        %v1441 = vlaneseq
        %v1442 = vshrl.u32 %v1441, 7
        %v1443 = vsub.s32 0, %v1442
        %v1444 = vrot.slane %v1439, %v1443
        %v1445 = vadd.f32 %v1425, %v1444
        %v1446 = vadd.f32 %v1434, %v1444
        %v1447 = vxor.u32 %v1445, 2147483648
        %v1448 = vxor.u32 %v1446, 2147483648
        %v1449 = vmul.f32 %v1447, 1.442695
        %v1450 = vpow.pop %v1449
        %v1451 = vmul.f32 %v1448, 1.442695
        %v1452 = vpow.pop %v1451
        %v1453 = vadd.f32 %v1450, 1.0
        %v1454 = vadd.f32 %v1452, 1.0
        %v1455 = vrcp.pop %v1453
        %v1456 = vmul.f32 1.0, %v1455
        %v1457 = vrcp.pop %v1454
        %v1458 = vmul.f32 1.0, %v1457
        %v1461 = vcombine.low %v1456, %v1458
        %v1463 = vunpack.c.l.s4 1966171168
        %v1464 = vunpack.c.0.s8 %v1463
        %v1465 = vlaneseq
        %v1466 = vshrl.u32 %v1465, 7
        %v1467 = vsub.s32 %v1464, %v1466
        %v1468 = vrot.slane %v1461, %v1467
        %v1470 = vunpack.c.l.s4 1966171168
        %v1471 = vunpack.c.0.s8 %v1470
        %v1472 = vlaneseq
        %v1473 = vshrl.u32 %v1472, 7
        %v1474 = vsub.s32 %v1471, %v1473
        %v1475 = vrot.slane %v1468, %v1474
        %v1477 = vlaneseq
        %vm1478 = vcmp.ge.s32.totalorder %v1477, 0
        %vm1479 = vcmp.lt.s32.totalorder %v1477, 256
        %vm1480 = vmand %vm1478, %vm1479
        %1481 = vst.msk [vmem:[%s340] sm:$0x3] %vm1480, %v1475
        %s1482 = sand.u32 %s227, 1
        %s1483 = scalar_lea.sflag [#allocation4], %s1482
        %s1484 = sand.u32 %s227, 1
        %s1485 = smul.addr %s1484, 2
        %s1486 = scalar_lea.vmem [#allocation3], %s1485
        // Predicated region
        $region57: #{tpu_custom_call.1} parent=55 // pred_check
          %p1487 = pneg %p237
        $region58: #{tpu_custom_call.1} parent=55 // pred_check_branch
          %1489 = sbr.rel (%p1487) target = $region60
        $region59: #{tpu_custom_call.1} parent=55 // pred_region
          %s1490 = smul.u32 2, %s25
          %s1491 = ssub.s32 3, %s1490
          %p1492 = scmp.lt.s32.totalorder %s1491, 2
          %s1493 = scalar_select %p1492, %s1491, 2
          %s1494 = smul.u32 16, %s1493
          %s1496 = ssub.s32 32, %s1494
          %1497 = vsyncadd %s1483, %s1496
          %p1498 = scmp.ne.s32.totalorder 0, %s1494
          %s1499 = smul.addr %s1490, 16
          %s1500 = scalar_lea.hbm %s9, %s1499
          %s1501 = sshll.u32 %s1493, 4
          %s1502 = sshll.u32 %s1486, 4
          %s1503 = int_to_ptr.vmem [resolvable:$true] %s1502
          %1505 = dma.vmem_to_hbm [thread:$0]  (%p1498), %s1503, %s1501, %s1500, %s1483
        $region60: #{tpu_custom_call.1} parent=55 // pred_fallthru
          _
      $region56: #{tpu_custom_call.1} parent=5 // pred_fallthru
        _
      %p1506 = scmp.le.s32.totalorder 2, %s20
      // Predicated region
      $region61: #{tpu_custom_call.1} parent=5 // pred_check
        %p1507 = pneg %p1506
      $region62: #{tpu_custom_call.1} parent=5 // pred_check_branch
        %1509 = sbr.rel (%p1507) target = $region64
      $region63: #{tpu_custom_call.1} parent=5 // pred_region
        %s1510 = ssub.s32 %s20, 2
        // Predicated region
        $region65: #{tpu_custom_call.1} parent=63 // pred_check
          %p1511 = pneg %p243
        $region66: #{tpu_custom_call.1} parent=63 // pred_check_branch
          %1513 = sbr.rel (%p1511) target = $region68
        $region67: #{tpu_custom_call.1} parent=63 // pred_region
          %s1514 = sand.u32 %s228, 1
          %s1515 = scalar_lea.sflag [#allocation4], %s1514
          %s1516 = sand.u32 %s228, 1
          %s1517 = smul.addr %s1516, 2
          %s1518 = scalar_lea.vmem [#allocation3], %s1517
          %1519 = dma.done %s1515, 32
        $region68: #{tpu_custom_call.1} parent=63 // pred_fallthru
          _
      $region64: #{tpu_custom_call.1} parent=5 // pred_fallthru
        _
    $region6: #{tpu_custom_call.1} parent=1 // loop_footer
      %s24 = sadd.s32 1, %s20
    $region7: #{tpu_custom_call.1} parent=1 // loop_footer_branch
      %19 = sbr.rel target = $region3
    $region8: #{tpu_custom_call.1} parent=1 // loop_exit
      _
    %1520 = vsyncpa [#allocation4], 1
    %s1521 = scalar_lea.sflag [#allocation4], 1
    %1522 = vsyncpa %s1521, 1

</llo_original>
